<compile_context>
chip_gen: v6e
topology: v6e:2x2x1
jax: 0.10.0
libtpu: 0.0.40
codegen_flags: <defaults>
</compile_context>

<pallas_src>
import functools

import jax
import jax.numpy as jnp
from jax import lax
from jax.experimental import pallas as pl
from jax.experimental.pallas import tpu as pltpu

_INV_SQRT_2PI = 0.39894228


def _cagke_kernel(x_ref, mt_ref, noise_ref, out_ref, *, norm):
    # x_ref/out_ref: (bb, T); mt_ref: (T, T) mixed Gaussian kernel; noise_ref: (1, T)
    mask = (x_ref[...] > 0.5).astype(jnp.float32)                  # (bb, T)

    # Single tiny MXU pass fuses the i-reduction; D-reduction already folded into mt.
    p = jnp.dot(mask, mt_ref[...],
                preferred_element_type=jnp.float32,
                precision=lax.Precision.HIGHEST) + noise_ref[...]  # (bb, T)

    if norm:
        # Per-row min-max normalization (matches PyTorch: inf/nan if a row is constant).
        pmin = jnp.min(p, axis=1, keepdims=True)
        pmax = jnp.max(p, axis=1, keepdims=True)
        rng = pmax - pmin
        inv = pl.reciprocal(rng, approx=True)                      # EUP slot
        inv = inv * (2.0 - rng * inv)                              # one Newton step -> f32 accuracy
        out_ref[...] = (p - pmin) * inv
    else:
        out_ref[...] = p


def cagke_fix_forward(X, sigma, weight, noise, norm=True, block_b=None):
    """X: (B, T) float; sigma: (D,); weight: (1, D); noise: (1, T). Returns (B, T)."""
    B, T = X.shape

    # Single grid step by default at small B; callers with large B can set block_b
    # to get a multi-step "parallel" grid (both TensorCores on v7x).
    if block_b is None:
        block_b = min(B, 1024)
    block_b = min(block_b, B)
    assert B % block_b == 0, "batch must be a multiple of the row-block size"

    # Hoisted, data-independent mixed kernel matrix (computed once per call, host/XLA side):
    #   mt[i, j] = sum_d softmax(weight)[d] * (c/sigma_d) * exp(-(j-i-1)^2 / (2 sigma_d^2))
    smw = jax.nn.softmax(weight.astype(jnp.float32), axis=1)[0]          # (D,)
    sigma_f = sigma.astype(jnp.float32)
    coef = smw * (_INV_SQRT_2PI / sigma_f)                               # (D,)
    inv_2s2 = 1.0 / (2.0 * sigma_f * sigma_f)                            # (D,)
    i_idx = jnp.arange(T, dtype=jnp.float32)[:, None]
    j_idx = jnp.arange(T, dtype=jnp.float32)[None, :]
    diff2 = (j_idx - i_idx - 1.0) ** 2                                   # (T, T)
    mt = jnp.einsum(
        "d,dij->ij",
        coef,
        jnp.exp(-diff2[None, :, :] * inv_2s2[:, None, None]),
        precision=lax.Precision.HIGHEST,
    )                                                                    # (T, T)

    grid = (B // block_b,)
    kernel = functools.partial(_cagke_kernel, norm=norm)
    return pl.pallas_call(
        kernel,
        out_shape=jax.ShapeDtypeStruct((B, T), jnp.float32),
        grid_spec=pltpu.PrefetchScalarGridSpec(
            num_scalar_prefetch=0,
            grid=grid,
            in_specs=[
                pl.BlockSpec((block_b, T), lambda b: (b, 0)),     # X row block
                pl.BlockSpec((T, T), lambda b: (0, 0)),           # mixed Gaussian kernel
                pl.BlockSpec((1, T), lambda b: (0, 0)),           # shared noise row
            ],
            out_specs=pl.BlockSpec((block_b, T), lambda b: (b, 0)),
        ),
        compiler_params=pltpu.CompilerParams(
            dimension_semantics=("parallel",)),                   # both TCs on v7x when grid > 1
    )(X.astype(jnp.float32), mt, noise.astype(jnp.float32))


def cagke_fix_reference(X, sigma, weight, noise, norm=True):
    """Pure-JAX reference mirroring the PyTorch module, applied per row (no matmuls
    so it is exact f32 regardless of XLA's default dot precision)."""
    B, T = X.shape
    mask = (X > 0.5).astype(jnp.float32)                            # (B, T)
    i_idx = jnp.arange(T, dtype=jnp.float32)[:, None]
    j_idx = jnp.arange(T, dtype=jnp.float32)[None, :]
    diff2 = (j_idx - i_idx - 1.0) ** 2                              # (T, T)
    s = sigma.astype(jnp.float32)[:, None, None]                    # (D, 1, 1)
    kernels = (_INV_SQRT_2PI / s) * jnp.exp(-diff2[None] / (2.0 * s * s))  # (D, T, T)
    smw = jax.nn.softmax(weight.astype(jnp.float32), axis=1)[0]     # (D,)
    mt = jnp.sum(smw[:, None, None] * kernels, axis=0)              # (T, T)
    p = jnp.sum(mask[:, :, None] * mt[None, :, :], axis=1) + noise  # (B, T)
    if not norm:
        return p
    pmin = jnp.min(p, axis=1, keepdims=True)
    pmax = jnp.max(p, axis=1, keepdims=True)
    return (p - pmin) / (pmax - pmin)


if __name__ == "__main__":
    # Module config: in_length T = 16, embed_dim D = 8; batch B independent series
    # per call to amortize the ~µs pallas_call fixed overhead.
    T = 16
    D = 8
    B = 16
    sigma_min, sigma_max, noise_sigma = 0.4, 3.0, 0.01

    key = jax.random.PRNGKey(0)
    k_x, k_noise = jax.random.split(key)

    # Discrete binary time series, (B, T).
    X = (jax.random.uniform(k_x, (B, T)) > 0.5).astype(jnp.float32)

    # Deterministic parameters matching CAGKE_fix.__init__.
    sigma = jnp.linspace(sigma_min, sigma_max, D, dtype=jnp.float32)   # (D,)
    weight = jnp.ones((1, D), dtype=jnp.float32)                        # (1, D)
    noise = noise_sigma * jax.random.normal(k_noise, (1, T), dtype=jnp.float32)

    out = cagke_fix_forward(X, sigma, weight, noise)
    out = jax.block_until_ready(out)

    ref = cagke_fix_reference(X, sigma, weight, noise)
    assert out.shape == (B, T)
    assert bool(jnp.all(jnp.isfinite(out)))
    max_err = float(jnp.max(jnp.abs(out - ref)))
    assert jnp.allclose(out, ref, atol=1e-4, rtol=1e-4), max_err

    # Also sanity-check the un-normalized (norm=False) path.
    out_raw = jax.block_until_ready(cagke_fix_forward(X, sigma, weight, noise, norm=False))
    ref_raw = cagke_fix_reference(X, sigma, weight, noise, norm=False)
    assert jnp.allclose(out_raw, ref_raw, atol=1e-5, rtol=1e-5)

    print("KERNEL_OK")
</pallas_src>

<mosaic_0001>
module attributes {stable_mosaic.version = 11 : i64} {
  func.func @_cagke_kernel(%arg0: i32, %arg1: memref<16x16xf32, #tpu.memory_space<vmem>>, %arg2: memref<16x16xf32, #tpu.memory_space<vmem>>, %arg3: memref<1x16xf32, #tpu.memory_space<vmem>>, %arg4: memref<16x16xf32, #tpu.memory_space<vmem>>) attributes {dimension_semantics = [#tpu.dimension_semantics<parallel>], iteration_bounds = array<i64: 1>, scalar_prefetch = 0 : i64, scratch_operands = 0 : i64, tpu.core_type = #tpu.core_type<tc>, window_params = [{transform_indices = @transform_0, window_bounds = array<i64: 16, 16>}, {pipeline_mode = #tpu.pipeline_mode<synchronous>, transform_indices = @transform_1, window_bounds = array<i64: 16, 16>}, {pipeline_mode = #tpu.pipeline_mode<synchronous>, transform_indices = @transform_2, window_bounds = array<i64: 1, 16>}, {transform_indices = @transform_3, window_bounds = array<i64: 16, 16>}]} {
    %c0 = arith.constant 0 : index
    %c0_0 = arith.constant 0 : index
    %0 = vector.load %arg1[%c0, %c0_0] : memref<16x16xf32, #tpu.memory_space<vmem>>, vector<16x16xf32>
    %cst = arith.constant 5.000000e-01 : f32
    %1 = vector.broadcast %cst : f32 to vector<16x16xf32>
    %2 = arith.cmpf ogt, %0, %1 : vector<16x16xf32>
    %3 = arith.extui %2 : vector<16x16xi1> to vector<16x16xi32>
    %4 = arith.sitofp %3 : vector<16x16xi32> to vector<16x16xf32>
    %c0_1 = arith.constant 0 : index
    %c0_2 = arith.constant 0 : index
    %5 = vector.load %arg2[%c0_1, %c0_2] : memref<16x16xf32, #tpu.memory_space<vmem>>, vector<16x16xf32>
    %cst_3 = arith.constant dense<0.000000e+00> : vector<16x16xf32>
    %6 = tpu.matmul %4, %5, %cst_3 {dimension_numbers = #tpu.dot_dimension_numbers<[1], [0], [0], [1], [0, 0, 1, 1], [], []>, precision = #tpu.contract_precision<fp32>} : vector<16x16xf32>, vector<16x16xf32>, vector<16x16xf32> -> vector<16x16xf32>
    %c0_4 = arith.constant 0 : index
    %c0_5 = arith.constant 0 : index
    %7 = vector.load %arg3[%c0_4, %c0_5] : memref<1x16xf32, #tpu.memory_space<vmem>>, vector<1x16xf32>
    %8 = vector.broadcast %7 : vector<1x16xf32> to vector<16x16xf32>
    %9 = arith.addf %6, %8 : vector<16x16xf32>
    %cst_6 = arith.constant dense<0x7F800000> : vector<16xf32>
    %10 = vector.multi_reduction <minimumf>, %9, %cst_6 [1] : vector<16x16xf32> to vector<16xf32>
    %11 = vector.shape_cast %10 : vector<16xf32> to vector<16x1xf32>
    %cst_7 = arith.constant dense<0xFF800000> : vector<16xf32>
    %12 = vector.multi_reduction <maximumf>, %9, %cst_7 [1] : vector<16x16xf32> to vector<16xf32>
    %13 = vector.shape_cast %12 : vector<16xf32> to vector<16x1xf32>
    %14 = arith.subf %13, %11 : vector<16x1xf32>
    %15 = tpu.reciprocal %14 {approx = true} : vector<16x1xf32> -> vector<16x1xf32>
    %16 = arith.mulf %14, %15 : vector<16x1xf32>
    %cst_8 = arith.constant 2.000000e+00 : f32
    %17 = vector.broadcast %cst_8 : f32 to vector<16x1xf32>
    %18 = arith.subf %17, %16 : vector<16x1xf32>
    %19 = arith.mulf %15, %18 : vector<16x1xf32>
    %20 = vector.broadcast %11 : vector<16x1xf32> to vector<16x16xf32>
    %21 = arith.subf %9, %20 : vector<16x16xf32>
    %22 = vector.broadcast %19 : vector<16x1xf32> to vector<16x16xf32>
    %23 = arith.mulf %21, %22 : vector<16x16xf32>
    %c0_9 = arith.constant 0 : index
    %c0_10 = arith.constant 0 : index
    %24 = vector.load %arg4[%c0_9, %c0_10] : memref<16x16xf32, #tpu.memory_space<vmem>>, vector<16x16xf32>
    tpu.vector_store %arg4[%c0_9, %c0_10], %23 {strides = array<i32>} : memref<16x16xf32, #tpu.memory_space<vmem>>, vector<16x16xf32>,
    return
  }
  func.func @transform_0(%arg0: i32) -> (i32, i32) {
    %c0_i32 = arith.constant 0 : i32
    %c0_i32_0 = arith.constant 0 : i32
    return %arg0, %c0_i32 : i32, i32
  }
  func.func @transform_1(%arg0: i32) -> (i32, i32) {
    %c0_i32 = arith.constant 0 : i32
    %c0_i32_0 = arith.constant 0 : i32
    %c0_i32_1 = arith.constant 0 : i32
    return %c0_i32, %c0_i32_0 : i32, i32
  }
  func.func @transform_2(%arg0: i32) -> (i32, i32) {
    %c0_i32 = arith.constant 0 : i32
    %c0_i32_0 = arith.constant 0 : i32
    %c0_i32_1 = arith.constant 0 : i32
    return %c0_i32, %c0_i32_0 : i32, i32
  }
  func.func @transform_3(%arg0: i32) -> (i32, i32) {
    %c0_i32 = arith.constant 0 : i32
    %c0_i32_0 = arith.constant 0 : i32
    return %arg0, %c0_i32 : i32, i32
  }
}

</mosaic_0001>

<llo_original>
// kernel: tpu_custom_call.1
$region0: #{tpu_custom_call.1}
  #allocation0 [shape = 'u32[]', space=smem, size = 0x4, offset = 0x4, fixed_abs, tag = 'smem constant byte address 0x4 - core index']
  #allocation1 [shape = 'u32[144,128]{1,0:T(1,128)}', space=vmem, size = 0x12000, scoped, tag = 'internal scratch']
  %s0 = inlined_call_operand.hbm [shape: f32[16,16], index: 0, kind: input, shape index: {}]
  %s1 = inlined_call_operand.hbm [shape: f32[16,16], index: 1, kind: input, shape index: {}]
  %s2 = inlined_call_operand.vmem [shape: f32[1,16], index: 2, kind: input, shape index: {}]
  %s3 = inlined_call_operand.hbm [shape: f32[16,16], index: 3, kind: output, shape index: {}]
  %s4 = sld [smem:[#allocation0]]
  $region30: #{tpu_custom_call.1} parent=0
    _
  %s6 = ssub.s32 1, %s4
  %s7 = scalar_select 0, %s6, %s4
  $region1: #{tpu_custom_call.1} parent=0
    #allocation2 [shape = 'u8[8192]{0}', space=vmem, size = 0x2000, scoped, tag = 'input window, operand 0, single buffered']
    #allocation3 [shape = 's32[1]{0}', space=sflag, size = 0x4, scoped, tag = 'scoped memory for tpu_custom_call.1']
    #allocation4 [shape = 's32[1]{0}', space=sflag, size = 0x4, scoped, tag = 'scoped memory for tpu_custom_call.1']
    #allocation5 [shape = 'u8[8192]{0}', space=vmem, size = 0x2000, scoped, tag = 'input window, operand 1, single buffered']
    #allocation6 [shape = 's32[1]{0}', space=sflag, size = 0x4, scoped, tag = 'scoped memory for tpu_custom_call.1']
    #allocation7 [shape = 'u8[8192]{0}', space=vmem, size = 0x2000, scoped, tag = 'output window, operand 0, single buffered']
    %8 = vsyncpa [#allocation3], 0
    %9 = vsyncpa [#allocation6], 0
    %10 = vsyncpa [#allocation4], 0
    // Predicated region
    $region2: #{tpu_custom_call.1} parent=1 // pred_check
      _
    $region3: #{tpu_custom_call.1} parent=1 // pred_check_branch
      %12 = sbr.rel (0) target = $region5
    $region4: #{tpu_custom_call.1} parent=1 // pred_region
      %s14 = ssub.s32 256, 256
      %15 = vsyncadd [#allocation3], %s14
      %s16 = sshll.u32 [#allocation2], 4
      %s17 = int_to_ptr.vmem [resolvable:$true] %s16
      %22 = dma.hbm_to_vmem [thread:$0]  %s0, 256, %s17, [#allocation3], 128, 128, 8
    $region5: #{tpu_custom_call.1} parent=1 // pred_fallthru
      _
    // Predicated region
    $region6: #{tpu_custom_call.1} parent=1 // pred_check
      _
    $region7: #{tpu_custom_call.1} parent=1 // pred_check_branch
      %24 = sbr.rel (0) target = $region9
    $region8: #{tpu_custom_call.1} parent=1 // pred_region
      %s26 = ssub.s32 256, 256
      %27 = vsyncadd [#allocation6], %s26
      %s28 = sshll.u32 [#allocation5], 4
      %s29 = int_to_ptr.vmem [resolvable:$true] %s28
      %34 = dma.hbm_to_vmem [thread:$0]  %s1, 256, %s29, [#allocation6], 128, 128, 8
    $region9: #{tpu_custom_call.1} parent=1 // pred_fallthru
      _
    // Predicated region
    $region10: #{tpu_custom_call.1} parent=1 // pred_check
      _
    $region11: #{tpu_custom_call.1} parent=1 // pred_check_branch
      %36 = sbr.rel (0) target = $region13
    $region12: #{tpu_custom_call.1} parent=1 // pred_region
      _
    $region13: #{tpu_custom_call.1} parent=1 // pred_fallthru
      _
    // Predicated region
    $region14: #{tpu_custom_call.1} parent=1 // pred_check
      _
    $region15: #{tpu_custom_call.1} parent=1 // pred_check_branch
      %38 = sbr.rel (0) target = $region17
    $region16: #{tpu_custom_call.1} parent=1 // pred_region
      %39 = dma.done [#allocation3], 256
    $region17: #{tpu_custom_call.1} parent=1 // pred_fallthru
      _
    // Predicated region
    $region18: #{tpu_custom_call.1} parent=1 // pred_check
      _
    $region19: #{tpu_custom_call.1} parent=1 // pred_check_branch
      %41 = sbr.rel (0) target = $region21
    $region20: #{tpu_custom_call.1} parent=1 // pred_region
      %42 = dma.done [#allocation6], 256
    $region21: #{tpu_custom_call.1} parent=1 // pred_fallthru
      _
    %v43 = vld [vmem:[#allocation2] sm:$0xff]
    %v44 = vld [vmem:[#allocation2 + $0x8] sm:$0xff]
    %vm45 = vcmp.gt.f32.partialorder %v43, 0.5
    %vm46 = vcmp.gt.f32.partialorder %v44, 0.5
    %v47 = vsel %vm45, 1, 0
    %v48 = vsel %vm46, 1, 0
    %v49 = vcvt.s32.f32 %v47
    %v50 = vcvt.s32.f32 %v48
    %v51 = vld [vmem:[#allocation5] sm:$0xff]
    %v52 = vld [vmem:[#allocation5 + $0x8] sm:$0xff]
    %v53 = vld [vmem:[%s2] sm:$0x1]
    %v55 = vlaneseq
    %v56 = vshrl.u32 %v55, 7
    %v57 = vsub.s32 0, %v56
    %v58 = vrot.slane %v53, %v57
    %vm60 = vcmask 130048
    %v62 = vsel %vm60, %v49, 0
    %v65 = vsel %vm60, %v50, 0
    %67 = vmatprep.subr.mxu0 0.0
    %68 = vmatpush1.msra.mxu0 0.0
    %69 = vmatprep.subr.mxu0 0.0
    %70 = vmatpush1.msra.mxu0 0.0
    %71 = vmatprep.subr.mxu0 0.0
    %72 = vmatpush1.msra.mxu0 0.0
    %73 = vmatprep.subr.mxu0 0.0
    %74 = vmatpush1.msra.mxu0 0.0
    %75 = vmatprep.subr.mxu0 0.0
    %76 = vmatpush1.msra.mxu0 0.0
    %77 = vmatprep.subr.mxu0 0.0
    %78 = vmatpush1.msra.mxu0 0.0
    %79 = vmatprep.subr.mxu0 0.0
    %80 = vmatpush1.msra.mxu0 0.0
    %81 = vmatprep.subr.mxu0 0.0
    %82 = vmatpush1.msra.mxu0 0.0
    %83 = vmatprep.subr.mxu0 0.0
    %84 = vmatpush1.msra.mxu0 0.0
    %85 = vmatprep.subr.mxu0 0.0
    %86 = vmatpush1.msra.mxu0 0.0
    %87 = vmatprep.subr.mxu0 0.0
    %88 = vmatpush1.msra.mxu0 0.0
    %89 = vmatprep.subr.mxu0 0.0
    %90 = vmatpush1.msra.mxu0 0.0
    %91 = vmatprep.subr.mxu0 0.0
    %92 = vmatpush1.msra.mxu0 0.0
    %93 = vmatprep.subr.mxu0 0.0
    %94 = vmatpush1.msra.mxu0 0.0
    %95 = vmatprep.subr.mxu0 0.0
    %v96 = vand.u32 %v52, 4294901760
    %97 = vmatpush1.msra.mxu0 %v96
    %98 = vmatprep.subr.mxu0 0.0
    %v99 = vand.u32 %v51, 4294901760
    %100 = vmatpush1.msra.mxu0 %v99
    %101 = vmatprep.subr.mxu0 0.0
    %102 = vmatpush2.msra.mxu0 0.0
    %103 = vmatprep.subr.mxu0 0.0
    %104 = vmatpush2.msra.mxu0 0.0
    %105 = vmatprep.subr.mxu0 0.0
    %106 = vmatpush2.msra.mxu0 0.0
    %107 = vmatprep.subr.mxu0 0.0
    %108 = vmatpush2.msra.mxu0 0.0
    %109 = vmatprep.subr.mxu0 0.0
    %110 = vmatpush2.msra.mxu0 0.0
    %111 = vmatprep.subr.mxu0 0.0
    %112 = vmatpush2.msra.mxu0 0.0
    %113 = vmatprep.subr.mxu0 0.0
    %114 = vmatpush2.msra.mxu0 0.0
    %115 = vmatprep.subr.mxu0 0.0
    %116 = vmatpush2.msra.mxu0 0.0
    %117 = vmatprep.subr.mxu0 0.0
    %118 = vmatpush2.msra.mxu0 0.0
    %119 = vmatprep.subr.mxu0 0.0
    %120 = vmatpush2.msra.mxu0 0.0
    %121 = vmatprep.subr.mxu0 0.0
    %122 = vmatpush2.msra.mxu0 0.0
    %123 = vmatprep.subr.mxu0 0.0
    %124 = vmatpush2.msra.mxu0 0.0
    %125 = vmatprep.subr.mxu0 0.0
    %126 = vmatpush2.msra.mxu0 0.0
    %127 = vmatprep.subr.mxu0 0.0
    %128 = vmatpush2.msra.mxu0 0.0
    %129 = vmatprep.subr.mxu0 0.0
    %130 = vmatpush2.msra.mxu0 0.0
    %131 = vmatprep.subr.mxu0 0.0
    %132 = vmatpush2.msra.mxu0 0.0
    %133 = vmatprep.mubr.f32.mxu0 0.0
    %v134 = vand.u32 %v62, 4294901760
    %v135 = vsub.f32 %v62, %v134
    %v136 = vand.u32 %v135, 4294901760
    %v137 = vsub.f32 %v135, %v136
    %v138 = vand.u32 %v137, 4294901760
    %139 = vmatmul.mubr.f32.gmra.mxu0 %v138
    %v140 = vpop.f32.mrf.mxu0
    %v141 = vadd.f32 %v58, %v140
    %v142 = vpop.f32.mrf.mxu0
    %143 = vmatprep.mubr.f32.mxu0 0.0
    %v144 = vand.u32 %v65, 4294901760
    %v145 = vsub.f32 %v65, %v144
    %v146 = vand.u32 %v145, 4294901760
    %v147 = vsub.f32 %v145, %v146
    %v148 = vand.u32 %v147, 4294901760
    %149 = vmatmul.mubr.f32.gmra.mxu0 %v148
    %v150 = vpop.f32.mrf.mxu0
    %v151 = vadd.f32 %v58, %v150
    %v152 = vpop.f32.mrf.mxu0
    %153 = vdwg.mxu0
    %154 = vmatprep.subr.mxu0 0.0
    %155 = vmatpush1.msra.mxu0 0.0
    %156 = vmatprep.subr.mxu0 0.0
    %157 = vmatpush1.msra.mxu0 0.0
    %158 = vmatprep.subr.mxu0 0.0
    %159 = vmatpush1.msra.mxu0 0.0
    %160 = vmatprep.subr.mxu0 0.0
    %161 = vmatpush1.msra.mxu0 0.0
    %162 = vmatprep.subr.mxu0 0.0
    %163 = vmatpush1.msra.mxu0 0.0
    %164 = vmatprep.subr.mxu0 0.0
    %165 = vmatpush1.msra.mxu0 0.0
    %166 = vmatprep.subr.mxu0 0.0
    %167 = vmatpush1.msra.mxu0 0.0
    %168 = vmatprep.subr.mxu0 0.0
    %169 = vmatpush1.msra.mxu0 0.0
    %170 = vmatprep.subr.mxu0 0.0
    %171 = vmatpush1.msra.mxu0 0.0
    %172 = vmatprep.subr.mxu0 0.0
    %173 = vmatpush1.msra.mxu0 0.0
    %174 = vmatprep.subr.mxu0 0.0
    %175 = vmatpush1.msra.mxu0 0.0
    %176 = vmatprep.subr.mxu0 0.0
    %177 = vmatpush1.msra.mxu0 0.0
    %178 = vmatprep.subr.mxu0 0.0
    %179 = vmatpush1.msra.mxu0 0.0
    %180 = vmatprep.subr.mxu0 0.0
    %181 = vmatpush1.msra.mxu0 0.0
    %182 = vmatprep.subr.mxu0 0.0
    %v183 = vand.u32 %v52, 4294901760
    %v184 = vsub.f32 %v52, %v183
    %v185 = vand.u32 %v184, 4294901760
    %v186 = vsub.f32 %v184, %v185
    %v187 = vand.u32 %v186, 4294901760
    %188 = vmatpush1.msra.mxu0 %v187
    %189 = vmatprep.subr.mxu0 0.0
    %v190 = vand.u32 %v51, 4294901760
    %v191 = vsub.f32 %v51, %v190
    %v192 = vand.u32 %v191, 4294901760
    %v193 = vsub.f32 %v191, %v192
    %v194 = vand.u32 %v193, 4294901760
    %195 = vmatpush1.msra.mxu0 %v194
    %196 = vmatprep.subr.mxu0 0.0
    %197 = vmatpush2.msra.mxu0 0.0
    %198 = vmatprep.subr.mxu0 0.0
    %199 = vmatpush2.msra.mxu0 0.0
    %200 = vmatprep.subr.mxu0 0.0
    %201 = vmatpush2.msra.mxu0 0.0
    %202 = vmatprep.subr.mxu0 0.0
    %203 = vmatpush2.msra.mxu0 0.0
    %204 = vmatprep.subr.mxu0 0.0
    %205 = vmatpush2.msra.mxu0 0.0
    %206 = vmatprep.subr.mxu0 0.0
    %207 = vmatpush2.msra.mxu0 0.0
    %208 = vmatprep.subr.mxu0 0.0
    %209 = vmatpush2.msra.mxu0 0.0
    %210 = vmatprep.subr.mxu0 0.0
    %211 = vmatpush2.msra.mxu0 0.0
    %212 = vmatprep.subr.mxu0 0.0
    %213 = vmatpush2.msra.mxu0 0.0
    %214 = vmatprep.subr.mxu0 0.0
    %215 = vmatpush2.msra.mxu0 0.0
    %216 = vmatprep.subr.mxu0 0.0
    %217 = vmatpush2.msra.mxu0 0.0
    %218 = vmatprep.subr.mxu0 0.0
    %219 = vmatpush2.msra.mxu0 0.0
    %220 = vmatprep.subr.mxu0 0.0
    %221 = vmatpush2.msra.mxu0 0.0
    %222 = vmatprep.subr.mxu0 0.0
    %223 = vmatpush2.msra.mxu0 0.0
    %224 = vmatprep.subr.mxu0 0.0
    %225 = vmatpush2.msra.mxu0 0.0
    %226 = vmatprep.subr.mxu0 0.0
    %227 = vmatpush2.msra.mxu0 0.0
    %228 = vmatprep.mubr.f32.mxu0 0.0
    %v229 = vand.u32 %v62, 4294901760
    %230 = vmatmul.mubr.f32.gmra.mxu0 %v229
    %v231 = vpop.f32.mrf.mxu0
    %v232 = vadd.f32 %v141, %v231
    %v233 = vpop.f32.mrf.mxu0
    %234 = vmatprep.mubr.f32.mxu0 0.0
    %v235 = vand.u32 %v65, 4294901760
    %236 = vmatmul.mubr.f32.gmra.mxu0 %v235
    %v237 = vpop.f32.mrf.mxu0
    %v238 = vadd.f32 %v151, %v237
    %v239 = vpop.f32.mrf.mxu0
    %240 = vdwg.mxu0
    %241 = vmatprep.subr.mxu0 0.0
    %242 = vmatpush1.msra.mxu0 0.0
    %243 = vmatprep.subr.mxu0 0.0
    %244 = vmatpush1.msra.mxu0 0.0
    %245 = vmatprep.subr.mxu0 0.0
    %246 = vmatpush1.msra.mxu0 0.0
    %247 = vmatprep.subr.mxu0 0.0
    %248 = vmatpush1.msra.mxu0 0.0
    %249 = vmatprep.subr.mxu0 0.0
    %250 = vmatpush1.msra.mxu0 0.0
    %251 = vmatprep.subr.mxu0 0.0
    %252 = vmatpush1.msra.mxu0 0.0
    %253 = vmatprep.subr.mxu0 0.0
    %254 = vmatpush1.msra.mxu0 0.0
    %255 = vmatprep.subr.mxu0 0.0
    %256 = vmatpush1.msra.mxu0 0.0
    %257 = vmatprep.subr.mxu0 0.0
    %258 = vmatpush1.msra.mxu0 0.0
    %259 = vmatprep.subr.mxu0 0.0
    %260 = vmatpush1.msra.mxu0 0.0
    %261 = vmatprep.subr.mxu0 0.0
    %262 = vmatpush1.msra.mxu0 0.0
    %263 = vmatprep.subr.mxu0 0.0
    %264 = vmatpush1.msra.mxu0 0.0
    %265 = vmatprep.subr.mxu0 0.0
    %266 = vmatpush1.msra.mxu0 0.0
    %267 = vmatprep.subr.mxu0 0.0
    %268 = vmatpush1.msra.mxu0 0.0
    %269 = vmatprep.subr.mxu0 0.0
    %v270 = vand.u32 %v52, 4294901760
    %v271 = vsub.f32 %v52, %v270
    %272 = vmatpush1.msra.mxu0 %v271
    %273 = vmatprep.subr.mxu0 0.0
    %v274 = vand.u32 %v51, 4294901760
    %v275 = vsub.f32 %v51, %v274
    %276 = vmatpush1.msra.mxu0 %v275
    %277 = vmatprep.subr.mxu0 0.0
    %278 = vmatpush2.msra.mxu0 0.0
    %279 = vmatprep.subr.mxu0 0.0
    %280 = vmatpush2.msra.mxu0 0.0
    %281 = vmatprep.subr.mxu0 0.0
    %282 = vmatpush2.msra.mxu0 0.0
    %283 = vmatprep.subr.mxu0 0.0
    %284 = vmatpush2.msra.mxu0 0.0
    %285 = vmatprep.subr.mxu0 0.0
    %286 = vmatpush2.msra.mxu0 0.0
    %287 = vmatprep.subr.mxu0 0.0
    %288 = vmatpush2.msra.mxu0 0.0
    %289 = vmatprep.subr.mxu0 0.0
    %290 = vmatpush2.msra.mxu0 0.0
    %291 = vmatprep.subr.mxu0 0.0
    %292 = vmatpush2.msra.mxu0 0.0
    %293 = vmatprep.subr.mxu0 0.0
    %294 = vmatpush2.msra.mxu0 0.0
    %295 = vmatprep.subr.mxu0 0.0
    %296 = vmatpush2.msra.mxu0 0.0
    %297 = vmatprep.subr.mxu0 0.0
    %298 = vmatpush2.msra.mxu0 0.0
    %299 = vmatprep.subr.mxu0 0.0
    %300 = vmatpush2.msra.mxu0 0.0
    %301 = vmatprep.subr.mxu0 0.0
    %302 = vmatpush2.msra.mxu0 0.0
    %303 = vmatprep.subr.mxu0 0.0
    %304 = vmatpush2.msra.mxu0 0.0
    %305 = vmatprep.subr.mxu0 0.0
    %306 = vmatpush2.msra.mxu0 0.0
    %307 = vmatprep.subr.mxu0 0.0
    %308 = vmatpush2.msra.mxu0 0.0
    %309 = vmatprep.mubr.f32.mxu0 0.0
    %v310 = vand.u32 %v62, 4294901760
    %v311 = vsub.f32 %v62, %v310
    %312 = vmatmul.mubr.f32.gmra.mxu0 %v311
    %v313 = vpop.f32.mrf.mxu0
    %v314 = vadd.f32 %v232, %v313
    %v315 = vpop.f32.mrf.mxu0
    %316 = vmatprep.mubr.f32.mxu0 0.0
    %v317 = vand.u32 %v65, 4294901760
    %v318 = vsub.f32 %v65, %v317
    %319 = vmatmul.mubr.f32.gmra.mxu0 %v318
    %v320 = vpop.f32.mrf.mxu0
    %v321 = vadd.f32 %v238, %v320
    %v322 = vpop.f32.mrf.mxu0
    %323 = vdwg.mxu0
    %324 = vmatprep.subr.mxu0 0.0
    %325 = vmatpush1.msra.mxu0 0.0
    %326 = vmatprep.subr.mxu0 0.0
    %327 = vmatpush1.msra.mxu0 0.0
    %328 = vmatprep.subr.mxu0 0.0
    %329 = vmatpush1.msra.mxu0 0.0
    %330 = vmatprep.subr.mxu0 0.0
    %331 = vmatpush1.msra.mxu0 0.0
    %332 = vmatprep.subr.mxu0 0.0
    %333 = vmatpush1.msra.mxu0 0.0
    %334 = vmatprep.subr.mxu0 0.0
    %335 = vmatpush1.msra.mxu0 0.0
    %336 = vmatprep.subr.mxu0 0.0
    %337 = vmatpush1.msra.mxu0 0.0
    %338 = vmatprep.subr.mxu0 0.0
    %339 = vmatpush1.msra.mxu0 0.0
    %340 = vmatprep.subr.mxu0 0.0
    %341 = vmatpush1.msra.mxu0 0.0
    %342 = vmatprep.subr.mxu0 0.0
    %343 = vmatpush1.msra.mxu0 0.0
    %344 = vmatprep.subr.mxu0 0.0
    %345 = vmatpush1.msra.mxu0 0.0
    %346 = vmatprep.subr.mxu0 0.0
    %347 = vmatpush1.msra.mxu0 0.0
    %348 = vmatprep.subr.mxu0 0.0
    %349 = vmatpush1.msra.mxu0 0.0
    %350 = vmatprep.subr.mxu0 0.0
    %351 = vmatpush1.msra.mxu0 0.0
    %352 = vmatprep.subr.mxu0 0.0
    %v353 = vand.u32 %v52, 4294901760
    %354 = vmatpush1.msra.mxu0 %v353
    %355 = vmatprep.subr.mxu0 0.0
    %v356 = vand.u32 %v51, 4294901760
    %357 = vmatpush1.msra.mxu0 %v356
    %358 = vmatprep.subr.mxu0 0.0
    %359 = vmatpush2.msra.mxu0 0.0
    %360 = vmatprep.subr.mxu0 0.0
    %361 = vmatpush2.msra.mxu0 0.0
    %362 = vmatprep.subr.mxu0 0.0
    %363 = vmatpush2.msra.mxu0 0.0
    %364 = vmatprep.subr.mxu0 0.0
    %365 = vmatpush2.msra.mxu0 0.0
    %366 = vmatprep.subr.mxu0 0.0
    %367 = vmatpush2.msra.mxu0 0.0
    %368 = vmatprep.subr.mxu0 0.0
    %369 = vmatpush2.msra.mxu0 0.0
    %370 = vmatprep.subr.mxu0 0.0
    %371 = vmatpush2.msra.mxu0 0.0
    %372 = vmatprep.subr.mxu0 0.0
    %373 = vmatpush2.msra.mxu0 0.0
    %374 = vmatprep.subr.mxu0 0.0
    %375 = vmatpush2.msra.mxu0 0.0
    %376 = vmatprep.subr.mxu0 0.0
    %377 = vmatpush2.msra.mxu0 0.0
    %378 = vmatprep.subr.mxu0 0.0
    %379 = vmatpush2.msra.mxu0 0.0
    %380 = vmatprep.subr.mxu0 0.0
    %381 = vmatpush2.msra.mxu0 0.0
    %382 = vmatprep.subr.mxu0 0.0
    %383 = vmatpush2.msra.mxu0 0.0
    %384 = vmatprep.subr.mxu0 0.0
    %385 = vmatpush2.msra.mxu0 0.0
    %386 = vmatprep.subr.mxu0 0.0
    %387 = vmatpush2.msra.mxu0 0.0
    %388 = vmatprep.subr.mxu0 0.0
    %389 = vmatpush2.msra.mxu0 0.0
    %390 = vmatprep.mubr.f32.mxu0 0.0
    %v391 = vand.u32 %v62, 4294901760
    %v392 = vsub.f32 %v62, %v391
    %v393 = vand.u32 %v392, 4294901760
    %394 = vmatmul.mubr.f32.gmra.mxu0 %v393
    %v395 = vpop.f32.mrf.mxu0
    %v396 = vadd.f32 %v314, %v395
    %v397 = vpop.f32.mrf.mxu0
    %398 = vmatprep.mubr.f32.mxu0 0.0
    %v399 = vand.u32 %v65, 4294901760
    %v400 = vsub.f32 %v65, %v399
    %v401 = vand.u32 %v400, 4294901760
    %402 = vmatmul.mubr.f32.gmra.mxu0 %v401
    %v403 = vpop.f32.mrf.mxu0
    %v404 = vadd.f32 %v321, %v403
    %v405 = vpop.f32.mrf.mxu0
    %406 = vdwg.mxu0
    %407 = vmatprep.subr.mxu0 0.0
    %408 = vmatpush1.msra.mxu0 0.0
    %409 = vmatprep.subr.mxu0 0.0
    %410 = vmatpush1.msra.mxu0 0.0
    %411 = vmatprep.subr.mxu0 0.0
    %412 = vmatpush1.msra.mxu0 0.0
    %413 = vmatprep.subr.mxu0 0.0
    %414 = vmatpush1.msra.mxu0 0.0
    %415 = vmatprep.subr.mxu0 0.0
    %416 = vmatpush1.msra.mxu0 0.0
    %417 = vmatprep.subr.mxu0 0.0
    %418 = vmatpush1.msra.mxu0 0.0
    %419 = vmatprep.subr.mxu0 0.0
    %420 = vmatpush1.msra.mxu0 0.0
    %421 = vmatprep.subr.mxu0 0.0
    %422 = vmatpush1.msra.mxu0 0.0
    %423 = vmatprep.subr.mxu0 0.0
    %424 = vmatpush1.msra.mxu0 0.0
    %425 = vmatprep.subr.mxu0 0.0
    %426 = vmatpush1.msra.mxu0 0.0
    %427 = vmatprep.subr.mxu0 0.0
    %428 = vmatpush1.msra.mxu0 0.0
    %429 = vmatprep.subr.mxu0 0.0
    %430 = vmatpush1.msra.mxu0 0.0
    %431 = vmatprep.subr.mxu0 0.0
    %432 = vmatpush1.msra.mxu0 0.0
    %433 = vmatprep.subr.mxu0 0.0
    %434 = vmatpush1.msra.mxu0 0.0
    %435 = vmatprep.subr.mxu0 0.0
    %v436 = vand.u32 %v52, 4294901760
    %v437 = vsub.f32 %v52, %v436
    %v438 = vand.u32 %v437, 4294901760
    %439 = vmatpush1.msra.mxu0 %v438
    %440 = vmatprep.subr.mxu0 0.0
    %v441 = vand.u32 %v51, 4294901760
    %v442 = vsub.f32 %v51, %v441
    %v443 = vand.u32 %v442, 4294901760
    %444 = vmatpush1.msra.mxu0 %v443
    %445 = vmatprep.subr.mxu0 0.0
    %446 = vmatpush2.msra.mxu0 0.0
    %447 = vmatprep.subr.mxu0 0.0
    %448 = vmatpush2.msra.mxu0 0.0
    %449 = vmatprep.subr.mxu0 0.0
    %450 = vmatpush2.msra.mxu0 0.0
    %451 = vmatprep.subr.mxu0 0.0
    %452 = vmatpush2.msra.mxu0 0.0
    %453 = vmatprep.subr.mxu0 0.0
    %454 = vmatpush2.msra.mxu0 0.0
    %455 = vmatprep.subr.mxu0 0.0
    %456 = vmatpush2.msra.mxu0 0.0
    %457 = vmatprep.subr.mxu0 0.0
    %458 = vmatpush2.msra.mxu0 0.0
    %459 = vmatprep.subr.mxu0 0.0
    %460 = vmatpush2.msra.mxu0 0.0
    %461 = vmatprep.subr.mxu0 0.0
    %462 = vmatpush2.msra.mxu0 0.0
    %463 = vmatprep.subr.mxu0 0.0
    %464 = vmatpush2.msra.mxu0 0.0
    %465 = vmatprep.subr.mxu0 0.0
    %466 = vmatpush2.msra.mxu0 0.0
    %467 = vmatprep.subr.mxu0 0.0
    %468 = vmatpush2.msra.mxu0 0.0
    %469 = vmatprep.subr.mxu0 0.0
    %470 = vmatpush2.msra.mxu0 0.0
    %471 = vmatprep.subr.mxu0 0.0
    %472 = vmatpush2.msra.mxu0 0.0
    %473 = vmatprep.subr.mxu0 0.0
    %474 = vmatpush2.msra.mxu0 0.0
    %475 = vmatprep.subr.mxu0 0.0
    %476 = vmatpush2.msra.mxu0 0.0
    %477 = vmatprep.mubr.f32.mxu0 0.0
    %v478 = vand.u32 %v62, 4294901760
    %479 = vmatmul.mubr.f32.gmra.mxu0 %v478
    %v480 = vpop.f32.mrf.mxu0
    %v481 = vadd.f32 %v396, %v480
    %v482 = vpop.f32.mrf.mxu0
    %483 = vmatprep.mubr.f32.mxu0 0.0
    %v484 = vand.u32 %v65, 4294901760
    %485 = vmatmul.mubr.f32.gmra.mxu0 %v484
    %v486 = vpop.f32.mrf.mxu0
    %v487 = vadd.f32 %v404, %v486
    %v488 = vpop.f32.mrf.mxu0
    %489 = vdwg.mxu0
    %490 = vmatprep.subr.mxu0 0.0
    %491 = vmatpush1.msra.mxu0 0.0
    %492 = vmatprep.subr.mxu0 0.0
    %493 = vmatpush1.msra.mxu0 0.0
    %494 = vmatprep.subr.mxu0 0.0
    %495 = vmatpush1.msra.mxu0 0.0
    %496 = vmatprep.subr.mxu0 0.0
    %497 = vmatpush1.msra.mxu0 0.0
    %498 = vmatprep.subr.mxu0 0.0
    %499 = vmatpush1.msra.mxu0 0.0
    %500 = vmatprep.subr.mxu0 0.0
    %501 = vmatpush1.msra.mxu0 0.0
    %502 = vmatprep.subr.mxu0 0.0
    %503 = vmatpush1.msra.mxu0 0.0
    %504 = vmatprep.subr.mxu0 0.0
    %505 = vmatpush1.msra.mxu0 0.0
    %506 = vmatprep.subr.mxu0 0.0
    %507 = vmatpush1.msra.mxu0 0.0
    %508 = vmatprep.subr.mxu0 0.0
    %509 = vmatpush1.msra.mxu0 0.0
    %510 = vmatprep.subr.mxu0 0.0
    %511 = vmatpush1.msra.mxu0 0.0
    %512 = vmatprep.subr.mxu0 0.0
    %513 = vmatpush1.msra.mxu0 0.0
    %514 = vmatprep.subr.mxu0 0.0
    %515 = vmatpush1.msra.mxu0 0.0
    %516 = vmatprep.subr.mxu0 0.0
    %517 = vmatpush1.msra.mxu0 0.0
    %518 = vmatprep.subr.mxu0 0.0
    %v519 = vand.u32 %v52, 4294901760
    %520 = vmatpush1.msra.mxu0 %v519
    %521 = vmatprep.subr.mxu0 0.0
    %v522 = vand.u32 %v51, 4294901760
    %523 = vmatpush1.msra.mxu0 %v522
    %524 = vmatprep.subr.mxu0 0.0
    %525 = vmatpush2.msra.mxu0 0.0
    %526 = vmatprep.subr.mxu0 0.0
    %527 = vmatpush2.msra.mxu0 0.0
    %528 = vmatprep.subr.mxu0 0.0
    %529 = vmatpush2.msra.mxu0 0.0
    %530 = vmatprep.subr.mxu0 0.0
    %531 = vmatpush2.msra.mxu0 0.0
    %532 = vmatprep.subr.mxu0 0.0
    %533 = vmatpush2.msra.mxu0 0.0
    %534 = vmatprep.subr.mxu0 0.0
    %535 = vmatpush2.msra.mxu0 0.0
    %536 = vmatprep.subr.mxu0 0.0
    %537 = vmatpush2.msra.mxu0 0.0
    %538 = vmatprep.subr.mxu0 0.0
    %539 = vmatpush2.msra.mxu0 0.0
    %540 = vmatprep.subr.mxu0 0.0
    %541 = vmatpush2.msra.mxu0 0.0
    %542 = vmatprep.subr.mxu0 0.0
    %543 = vmatpush2.msra.mxu0 0.0
    %544 = vmatprep.subr.mxu0 0.0
    %545 = vmatpush2.msra.mxu0 0.0
    %546 = vmatprep.subr.mxu0 0.0
    %547 = vmatpush2.msra.mxu0 0.0
    %548 = vmatprep.subr.mxu0 0.0
    %549 = vmatpush2.msra.mxu0 0.0
    %550 = vmatprep.subr.mxu0 0.0
    %551 = vmatpush2.msra.mxu0 0.0
    %552 = vmatprep.subr.mxu0 0.0
    %553 = vmatpush2.msra.mxu0 0.0
    %554 = vmatprep.subr.mxu0 0.0
    %555 = vmatpush2.msra.mxu0 0.0
    %556 = vmatprep.mubr.f32.mxu0 0.0
    %v557 = vand.u32 %v62, 4294901760
    %558 = vmatmul.mubr.f32.gmra.mxu0 %v557
    %v559 = vpop.f32.mrf.mxu0
    %v560 = vadd.f32 %v481, %v559
    %v561 = vpop.f32.mrf.mxu0
    %562 = vmatprep.mubr.f32.mxu0 0.0
    %v563 = vand.u32 %v65, 4294901760
    %564 = vmatmul.mubr.f32.gmra.mxu0 %v563
    %v565 = vpop.f32.mrf.mxu0
    %v566 = vadd.f32 %v487, %v565
    %v567 = vpop.f32.mrf.mxu0
    %568 = vdwg.mxu0
    %v569 = vsel %vm60, %v560, inf
    %570 = vmin.xlane.f32.xlu0 %v569
    %v571 = vpop.xlane.xlu0 %570
    %v572 = vsel %vm60, %v566, inf
    %573 = vmin.xlane.f32.xlu0 %v572
    %v574 = vpop.xlane.xlu0 %573
    %v575 = vsel %vm60, %v560, -inf
    %576 = vmax.xlane.f32.xlu0 %v575
    %v577 = vpop.xlane.xlu0 %576
    %v578 = vsel %vm60, %v566, -inf
    %579 = vmax.xlane.f32.xlu0 %v578
    %v580 = vpop.xlane.xlu0 %579
    %v581 = vsub.f32 %v577, %v571
    %v582 = vsub.f32 %v580, %v574
    %v583 = vrcp.pop %v581
    %v584 = vrcp.pop %v582
    %v585 = vmul.f32 %v581, %v583
    %v586 = vmul.f32 %v582, %v584
    %v587 = vsub.f32 2.0, %v585
    %v588 = vsub.f32 2.0, %v586
    %v589 = vmul.f32 %v583, %v587
    %v590 = vmul.f32 %v584, %v588
    %v591 = vsub.f32 %v560, %v571
    %v592 = vsub.f32 %v566, %v574
    %v593 = vmul.f32 %v591, %v589
    %v594 = vmul.f32 %v592, %v590
    %595 = vst.msk [vmem:[#allocation7] sm:$0xff] %vm60, %v593
    %596 = vst.msk [vmem:[#allocation7 + $0x8] sm:$0xff] %vm60, %v594
    // Predicated region
    $region22: #{tpu_custom_call.1} parent=1 // pred_check
      _
    $region23: #{tpu_custom_call.1} parent=1 // pred_check_branch
      %598 = sbr.rel (0) target = $region25
    $region24: #{tpu_custom_call.1} parent=1 // pred_region
      %s600 = ssub.s32 256, 256
      %601 = vsyncadd [#allocation4], %s600
      %s602 = sshll.u32 [#allocation7], 4
      %s603 = int_to_ptr.vmem [resolvable:$true] %s602
      %608 = dma.vmem_to_hbm [thread:$0]  %s603, 256, %s3, [#allocation4], 128, 128, 8
    $region25: #{tpu_custom_call.1} parent=1 // pred_fallthru
      _
    // Predicated region
    $region26: #{tpu_custom_call.1} parent=1 // pred_check
      _
    $region27: #{tpu_custom_call.1} parent=1 // pred_check_branch
      %610 = sbr.rel (0) target = $region29
    $region28: #{tpu_custom_call.1} parent=1 // pred_region
      %611 = dma.done [#allocation4], 256
    $region29: #{tpu_custom_call.1} parent=1 // pred_fallthru
      _
    %612 = vsyncpa [#allocation3], 1
    %613 = vsyncpa [#allocation6], 1
    %614 = vsyncpa [#allocation4], 1

</llo_original>
